<compile_context>
chip_gen: v5e
topology: v5e:2x2
jax: 0.10.0
libtpu: 0.0.40
codegen_flags: <defaults>
</compile_context>

<pallas_src>
import functools

import jax
import jax.numpy as jnp
from jax import lax
from jax.experimental import pallas as pl
from jax.experimental.pallas import tpu as pltpu


def _batch_criterion_kernel(x_tile_ref, x_full_ref, contrib_ref, *,
                            T, negM, half, B, tm, chunk):
    r0 = pl.program_id(0) * tm

    x_tile = x_tile_ref[...]            # (tm, D), already in the MXU dtype
    x_full = x_full_ref[...]            # (B, D), resident across grid steps

    # MXU: (tm, D) x (B, D)^T -> (tm, B); f32 accumulation.
    sim = lax.dot_general(
        x_tile, x_full, (((1,), (1,)), ((), ())),
        preferred_element_type=jnp.float32) * (1.0 / T)

    e = jnp.exp(sim)                    # (tm, B) f32 — the unavoidable B^2 EUP work

    row_g = lax.broadcasted_iota(jnp.int32, (tm, B), 0) + r0
    col = lax.broadcasted_iota(jnp.int32, (tm, B), 1)
    diag = col == row_g
    pos_col = jnp.where(row_g < half, row_g + half, row_g - half)
    is_pos = col == pos_col

    # Positive-pair logit, gathered pre-exp: log(pos) == sim[i, pos_col].
    pos_logit = jnp.sum(jnp.where(is_pos, sim, 0.0), axis=1, keepdims=True)   # (tm, 1)

    # Row sum of exp'd similarities with the diagonal zeroed (diag_mat in torch).
    e_nodiag = jnp.where(diag, 0.0, e)
    row_sum = jnp.sum(e_nodiag, axis=1, keepdims=True)                        # (tm, 1)

    if negM == 1.0:
        all_div = row_sum                                   # torch fast path
    else:
        pos = jnp.exp(pos_logit)                            # only tm extra EUP ops
        all_div = (row_sum - pos) * negM + pos

    inv_div = pl.reciprocal(all_div, approx=True)           # EUP slot, ~free
    log_div = jnp.log(all_div)                              # (tm, 1)

    # lnPon_i = sum_{j not in {i, pos_col}} log(1 - e_ij / all_div_i):
    # the diagonal contributes log(1) = 0 and the positive column cancels
    # exactly with torch's "- log(1 - lnPmt)" term, so both are masked to 1.0.
    neg_e = jnp.where(is_pos, 0.0, e_nodiag)
    t = jnp.maximum(1.0 - neg_e * inv_div, 1e-30)            # guard approx recip
    # Chunked-product log trick: multiply lane-aligned chunks on the VPU, then
    # take only `chunk` logs per row instead of B.
    prod = t[:, :chunk]
    for c in range(1, B // chunk):
        prod = prod * t[:, c * chunk:(c + 1) * chunk]
    lnPon = jnp.sum(jnp.log(prod), axis=1, keepdims=True)    # (tm, 1)

    # log(lnPmt) = log(pos) - log(all_div) = pos_logit - log_div.
    contrib_ref[...] = (pos_logit - log_div) + negM * lnPon


def _vmem_cap_bytes():
    phys = 128 * 1024 * 1024
    try:
        info = pltpu.get_tpu_info()
        phys = int(getattr(info, "vmem_capacity_bytes", phys))
    except Exception:
        pass
    # ~48 MiB on v7x (64 MiB physical), ~96 MiB on v5e/v6e (128 MiB physical).
    return (phys * 3) // 4


def _pick_row_tile(B, D, in_bytes, vmem_cap):
    """Largest multiple-of-8 row tile (>=16) dividing B that fits VMEM; prefer
    one that leaves >=2 grid steps so v7x can megacore-split the row axis."""
    def ws(c):  # 2x LHS buffers + resident RHS + ~6 f32 (c, B) working tiles
        return 2 * c * D * in_bytes + B * D * in_bytes + 6 * c * B * 4 + 16 * c * 4
    cands = [c for c in range(512, 8, -8)
             if B % c == 0 and 3 * ws(c) <= 2 * vmem_cap]
    for c in cands:
        if B // c >= 2:
            return c
    return cands[0] if cands else B      # tiny/odd batch: one full-block step


def batch_criterion(x, *, negM, T, matmul_dtype=None):
    """Pallas implementation of BatchCriterion.forward. Returns a scalar loss."""
    B, D = x.shape
    assert B % 2 == 0, "BatchCriterion expects an even batch (2 * batchSize rows)"
    half = B // 2

    if matmul_dtype is None:
        # Small T amplifies bf16 logit rounding by 1/T inside exp; use f32 MXU there.
        matmul_dtype = jnp.float32 if T < 0.25 else jnp.bfloat16
    xm = x.astype(matmul_dtype)          # cast ONCE in HBM, not per grid step
    in_bytes = jnp.dtype(matmul_dtype).itemsize

    vmem_cap = _vmem_cap_bytes()
    tm = _pick_row_tile(B, D, in_bytes, vmem_cap)
    grid = (B // tm,)
    chunk = 128 if B % 128 == 0 else B   # lane-aligned chunk width for the log trick

    est_vmem = (2 * tm * D * in_bytes    # double-buffered LHS tile
                + B * D * in_bytes       # single-buffered resident RHS
                + 6 * tm * B * 4         # f32 working tiles
                + 16 * tm * 4)
    vmem_limit = int(min(vmem_cap, max(32 * 1024 * 1024, 2 * est_vmem)))

    cost = pl.CostEstimate(
        flops=2 * B * B * D,
        transcendentals=B * B + B * chunk + 4 * B,
        # RHS is resident: count it once, not once per grid step.
        bytes_accessed=2 * B * D * in_bytes + B * 4,
    )

    kern = functools.partial(_batch_criterion_kernel, T=float(T), negM=float(negM),
                             half=half, B=B, tm=tm, chunk=chunk)

    def call(rhs_spec):
        return pl.pallas_call(
            kern,
            grid=grid,
            in_specs=[
                pl.BlockSpec((tm, D), lambda i: (i, 0)),   # query-row tile (LHS)
                rhs_spec,                                   # full x (RHS), resident
            ],
            out_specs=pl.BlockSpec((tm, 1), lambda i: (i, 0)),
            out_shape=jax.ShapeDtypeStruct((B, 1), jnp.float32),
            compiler_params=pltpu.CompilerParams(
                dimension_semantics=("parallel",),
                vmem_limit_bytes=vmem_limit,
            ),
            cost_estimate=cost,
        )(xm, xm)

    try:
        # Constant index_map => never re-fetched; single-buffer to halve RHS VMEM.
        contrib = call(pl.BlockSpec((B, D), lambda i: (0, 0),
                                    pipeline_mode=pl.Buffered(1)))
    except Exception:
        # Fallback for jax versions without pipeline_mode / Buffered(1) support.
        contrib = call(pl.BlockSpec((B, D), lambda i: (0, 0)))

    return -jnp.sum(contrib) / B


def batch_criterion_reference(x, *, negM, T):
    """Pure-JAX reference, line-by-line port of the PyTorch forward."""
    B = x.shape[0]
    half = B // 2
    xr = jnp.concatenate([x[half:], x[:half]], axis=0)
    pos = jnp.exp(jnp.sum(x * xr, axis=1) / T)
    diag_mat = 1.0 - jnp.eye(B, dtype=x.dtype)
    sim = jnp.dot(x, x.T, precision=jax.lax.Precision.HIGHEST)
    all_prob = jnp.exp(sim / T) * diag_mat
    if negM == 1:
        all_div = jnp.sum(all_prob, axis=1)
    else:
        all_div = (jnp.sum(all_prob, axis=1) - pos) * negM + pos
    lnPmt = pos / all_div
    lnPon = jnp.log(1.0 - all_prob / all_div[:, None])
    lnPon = jnp.sum(lnPon, axis=1) - jnp.log(1.0 - lnPmt)
    return -(jnp.sum(jnp.log(lnPmt)) + jnp.sum(lnPon) * negM) / B


if __name__ == "__main__":
    key = jax.random.PRNGKey(0)
    # constructor batchSize = 4  ->  forward input has B = 2 * 4 = 8 rows
    B, D = 8, 32

    x = jax.random.normal(key, (B, D), dtype=jnp.float32)
    x = x / jnp.linalg.norm(x, axis=1, keepdims=True)   # UEL features are L2-normalized

    # (negM=1, small T) exercises the main branch (f32 MXU path);
    # (negM=0.5, T=1) exercises the general all_div formula (bf16 MXU path).
    for negM, T in ((1.0, 0.1), (0.5, 1.0)):
        loss = batch_criterion(x, negM=negM, T=T)
        jax.block_until_ready(loss)
        ref = batch_criterion_reference(x, negM=negM, T=T)
        assert jnp.allclose(loss, ref, rtol=5e-2, atol=5e-2), (
            negM, T, float(loss), float(ref))
        assert bool(jnp.isfinite(loss)), (negM, T, float(loss))

    print("KERNEL_OK")
</pallas_src>

<mosaic_0001>
module attributes {stable_mosaic.version = 11 : i64} {
  func.func @_batch_criterion_kernel(%arg0: i32, %arg1: memref<8x32xf32, #tpu.memory_space<vmem>>, %arg2: memref<8x32xf32, #tpu.memory_space<vmem>>, %arg3: memref<8x1xf32, #tpu.memory_space<vmem>>) attributes {dimension_semantics = [#tpu.dimension_semantics<parallel>], iteration_bounds = array<i64: 1>, scalar_prefetch = 0 : i64, scratch_operands = 0 : i64, tpu.core_type = #tpu.core_type<tc>, window_params = [{transform_indices = @transform_0, window_bounds = array<i64: 8, 32>}, {pipeline_mode = #tpu.pipeline_mode<synchronous>, transform_indices = @transform_1, window_bounds = array<i64: 8, 32>}, {transform_indices = @transform_2, window_bounds = array<i64: 8, 1>}]} {
    %c8_i32 = arith.constant 8 : i32
    %0 = arith.muli %arg0, %c8_i32 : i32
    %c0 = arith.constant 0 : index
    %c0_0 = arith.constant 0 : index
    %1 = vector.load %arg1[%c0, %c0_0] : memref<8x32xf32, #tpu.memory_space<vmem>>, vector<8x32xf32>
    %c0_1 = arith.constant 0 : index
    %c0_2 = arith.constant 0 : index
    %2 = vector.load %arg2[%c0_1, %c0_2] : memref<8x32xf32, #tpu.memory_space<vmem>>, vector<8x32xf32>
    %cst = arith.constant dense<0.000000e+00> : vector<8x8xf32>
    %3 = tpu.matmul %1, %2, %cst {dimension_numbers = #tpu.dot_dimension_numbers<[1], [1], [0], [0], [0, 0, 1, 0], [], []>} : vector<8x32xf32>, vector<8x32xf32>, vector<8x8xf32> -> vector<8x8xf32>
    %cst_3 = arith.constant 1.000000e+01 : f32
    %4 = vector.broadcast %cst_3 : f32 to vector<8x8xf32>
    %5 = arith.mulf %3, %4 : vector<8x8xf32>
    %6 = math.exp %5 : vector<8x8xf32>
    %7 = tpu.iota {dimensions = array<i32: 0>} : vector<8x8xi32>
    %8 = vector.broadcast %0 : i32 to vector<8x8xi32>
    %9 = arith.addi %7, %8 : vector<8x8xi32>
    %10 = tpu.iota {dimensions = array<i32: 1>} : vector<8x8xi32>
    %11 = arith.cmpi eq, %10, %9 : vector<8x8xi32>
    %c4_i32 = arith.constant 4 : i32
    %12 = vector.broadcast %c4_i32 : i32 to vector<8x8xi32>
    %13 = arith.cmpi slt, %9, %12 : vector<8x8xi32>
    %c4_i32_4 = arith.constant 4 : i32
    %14 = vector.broadcast %c4_i32_4 : i32 to vector<8x8xi32>
    %15 = arith.addi %9, %14 : vector<8x8xi32>
    %c4_i32_5 = arith.constant 4 : i32
    %16 = vector.broadcast %c4_i32_5 : i32 to vector<8x8xi32>
    %17 = arith.subi %9, %16 : vector<8x8xi32>
    %18 = arith.select %13, %15, %17 : vector<8x8xi1>, vector<8x8xi32>
    %19 = arith.cmpi eq, %10, %18 : vector<8x8xi32>
    %cst_6 = arith.constant 0.000000e+00 : f32
    %20 = vector.broadcast %cst_6 : f32 to vector<8x8xf32>
    %21 = arith.select %19, %5, %20 : vector<8x8xi1>, vector<8x8xf32>
    %cst_7 = arith.constant dense<0.000000e+00> : vector<8xf32>
    %22 = vector.multi_reduction <add>, %21, %cst_7 [1] : vector<8x8xf32> to vector<8xf32>
    %23 = vector.shape_cast %22 : vector<8xf32> to vector<8x1xf32>
    %cst_8 = arith.constant 0.000000e+00 : f32
    %24 = vector.broadcast %cst_8 : f32 to vector<8x8xf32>
    %25 = arith.select %11, %24, %6 : vector<8x8xi1>, vector<8x8xf32>
    %cst_9 = arith.constant dense<0.000000e+00> : vector<8xf32>
    %26 = vector.multi_reduction <add>, %25, %cst_9 [1] : vector<8x8xf32> to vector<8xf32>
    %27 = vector.shape_cast %26 : vector<8xf32> to vector<8x1xf32>
    %28 = tpu.reciprocal %27 {approx = true} : vector<8x1xf32> -> vector<8x1xf32>
    %29 = math.log %27 : vector<8x1xf32>
    %cst_10 = arith.constant 0.000000e+00 : f32
    %30 = vector.broadcast %cst_10 : f32 to vector<8x8xf32>
    %31 = arith.select %19, %30, %25 : vector<8x8xi1>, vector<8x8xf32>
    %32 = vector.broadcast %28 : vector<8x1xf32> to vector<8x8xf32>
    %33 = arith.mulf %31, %32 : vector<8x8xf32>
    %cst_11 = arith.constant 1.000000e+00 : f32
    %34 = vector.broadcast %cst_11 : f32 to vector<8x8xf32>
    %35 = arith.subf %34, %33 : vector<8x8xf32>
    %cst_12 = arith.constant 1.000000e-30 : f32
    %36 = vector.broadcast %cst_12 : f32 to vector<8x8xf32>
    %37 = arith.maximumf %35, %36 : vector<8x8xf32>
    %38 = math.log %37 : vector<8x8xf32>
    %cst_13 = arith.constant dense<0.000000e+00> : vector<8xf32>
    %39 = vector.multi_reduction <add>, %38, %cst_13 [1] : vector<8x8xf32> to vector<8xf32>
    %40 = vector.shape_cast %39 : vector<8xf32> to vector<8x1xf32>
    %41 = arith.subf %23, %29 : vector<8x1xf32>
    %cst_14 = arith.constant 1.000000e+00 : f32
    %42 = vector.broadcast %cst_14 : f32 to vector<8x1xf32>
    %43 = arith.mulf %42, %40 : vector<8x1xf32>
    %44 = arith.addf %41, %43 : vector<8x1xf32>
    %c0_15 = arith.constant 0 : index
    %c0_16 = arith.constant 0 : index
    %45 = vector.load %arg3[%c0_15, %c0_16] : memref<8x1xf32, #tpu.memory_space<vmem>>, vector<8x1xf32>
    tpu.vector_store %arg3[%c0_15, %c0_16], %44 {strides = array<i32>} : memref<8x1xf32, #tpu.memory_space<vmem>>, vector<8x1xf32>,
    return
  }
  func.func @transform_0(%arg0: i32) -> (i32, i32) {
    %c0_i32 = arith.constant 0 : i32
    %c0_i32_0 = arith.constant 0 : i32
    return %arg0, %c0_i32 : i32, i32
  }
  func.func @transform_1(%arg0: i32) -> (i32, i32) {
    %c0_i32 = arith.constant 0 : i32
    %c0_i32_0 = arith.constant 0 : i32
    %c0_i32_1 = arith.constant 0 : i32
    return %c0_i32, %c0_i32_0 : i32, i32
  }
  func.func @transform_2(%arg0: i32) -> (i32, i32) {
    %c0_i32 = arith.constant 0 : i32
    %c0_i32_0 = arith.constant 0 : i32
    return %arg0, %c0_i32 : i32, i32
  }
}

module attributes {stable_mosaic.version = 11 : i64} {
  func.func @_batch_criterion_kernel(%arg0: i32, %arg1: memref<8x32xf32, #tpu.memory_space<vmem>>, %arg2: memref<8x32xf32, #tpu.memory_space<vmem>>, %arg3: memref<8x1xf32, #tpu.memory_space<vmem>>) attributes {dimension_semantics = [#tpu.dimension_semantics<parallel>], iteration_bounds = array<i64: 1>, scalar_prefetch = 0 : i64, scratch_operands = 0 : i64, tpu.core_type = #tpu.core_type<tc>, window_params = [{transform_indices = @transform_0, window_bounds = array<i64: 8, 32>}, {pipeline_mode = #tpu.pipeline_mode<synchronous>, transform_indices = @transform_1, window_bounds = array<i64: 8, 32>}, {transform_indices = @transform_2, window_bounds = array<i64: 8, 1>}]} {
    %c8_i32 = arith.constant 8 : i32
    %0 = arith.muli %arg0, %c8_i32 : i32
    %c0 = arith.constant 0 : index
    %c0_0 = arith.constant 0 : index
    %1 = vector.load %arg1[%c0, %c0_0] : memref<8x32xf32, #tpu.memory_space<vmem>>, vector<8x32xf32>
    %c0_1 = arith.constant 0 : index
    %c0_2 = arith.constant 0 : index
    %2 = vector.load %arg2[%c0_1, %c0_2] : memref<8x32xf32, #tpu.memory_space<vmem>>, vector<8x32xf32>
    %cst = arith.constant dense<0.000000e+00> : vector<8x8xf32>
    %3 = tpu.matmul %1, %2, %cst {dimension_numbers = #tpu.dot_dimension_numbers<[1], [1], [0], [0], [0, 0, 1, 0], [], []>} : vector<8x32xf32>, vector<8x32xf32>, vector<8x8xf32> -> vector<8x8xf32>
    %cst_3 = arith.constant 1.000000e+01 : f32
    %4 = vector.broadcast %cst_3 : f32 to vector<8x8xf32>
    %5 = arith.mulf %3, %4 : vector<8x8xf32>
    %6 = math.exp %5 : vector<8x8xf32>
    %7 = tpu.iota {dimensions = array<i32: 0>} : vector<8x8xi32>
    %8 = vector.broadcast %0 : i32 to vector<8x8xi32>
    %9 = arith.addi %7, %8 : vector<8x8xi32>
    %10 = tpu.iota {dimensions = array<i32: 1>} : vector<8x8xi32>
    %11 = arith.cmpi eq, %10, %9 : vector<8x8xi32>
    %c4_i32 = arith.constant 4 : i32
    %12 = vector.broadcast %c4_i32 : i32 to vector<8x8xi32>
    %13 = arith.cmpi slt, %9, %12 : vector<8x8xi32>
    %c4_i32_4 = arith.constant 4 : i32
    %14 = vector.broadcast %c4_i32_4 : i32 to vector<8x8xi32>
    %15 = arith.addi %9, %14 : vector<8x8xi32>
    %c4_i32_5 = arith.constant 4 : i32
    %16 = vector.broadcast %c4_i32_5 : i32 to vector<8x8xi32>
    %17 = arith.subi %9, %16 : vector<8x8xi32>
    %18 = arith.select %13, %15, %17 : vector<8x8xi1>, vector<8x8xi32>
    %19 = arith.cmpi eq, %10, %18 : vector<8x8xi32>
    %cst_6 = arith.constant 0.000000e+00 : f32
    %20 = vector.broadcast %cst_6 : f32 to vector<8x8xf32>
    %21 = arith.select %19, %5, %20 : vector<8x8xi1>, vector<8x8xf32>
    %cst_7 = arith.constant dense<0.000000e+00> : vector<8xf32>
    %22 = vector.multi_reduction <add>, %21, %cst_7 [1] : vector<8x8xf32> to vector<8xf32>
    %23 = vector.shape_cast %22 : vector<8xf32> to vector<8x1xf32>
    %cst_8 = arith.constant 0.000000e+00 : f32
    %24 = vector.broadcast %cst_8 : f32 to vector<8x8xf32>
    %25 = arith.select %11, %24, %6 : vector<8x8xi1>, vector<8x8xf32>
    %cst_9 = arith.constant dense<0.000000e+00> : vector<8xf32>
    %26 = vector.multi_reduction <add>, %25, %cst_9 [1] : vector<8x8xf32> to vector<8xf32>
    %27 = vector.shape_cast %26 : vector<8xf32> to vector<8x1xf32>
    %28 = tpu.reciprocal %27 {approx = true} : vector<8x1xf32> -> vector<8x1xf32>
    %29 = math.log %27 : vector<8x1xf32>
    %cst_10 = arith.constant 0.000000e+00 : f32
    %30 = vector.broadcast %cst_10 : f32 to vector<8x8xf32>
    %31 = arith.select %19, %30, %25 : vector<8x8xi1>, vector<8x8xf32>
    %32 = vector.broadcast %28 : vector<8x1xf32> to vector<8x8xf32>
    %33 = arith.mulf %31, %32 : vector<8x8xf32>
    %cst_11 = arith.constant 1.000000e+00 : f32
    %34 = vector.broadcast %cst_11 : f32 to vector<8x8xf32>
    %35 = arith.subf %34, %33 : vector<8x8xf32>
    %cst_12 = arith.constant 1.000000e-30 : f32
    %36 = vector.broadcast %cst_12 : f32 to vector<8x8xf32>
    %37 = arith.maximumf %35, %36 : vector<8x8xf32>
    %38 = math.log %37 : vector<8x8xf32>
    %cst_13 = arith.constant dense<0.000000e+00> : vector<8xf32>
    %39 = vector.multi_reduction <add>, %38, %cst_13 [1] : vector<8x8xf32> to vector<8xf32>
    %40 = vector.shape_cast %39 : vector<8xf32> to vector<8x1xf32>
    %41 = arith.subf %23, %29 : vector<8x1xf32>
    %cst_14 = arith.constant 1.000000e+00 : f32
    %42 = vector.broadcast %cst_14 : f32 to vector<8x1xf32>
    %43 = arith.mulf %42, %40 : vector<8x1xf32>
    %44 = arith.addf %41, %43 : vector<8x1xf32>
    %c0_15 = arith.constant 0 : index
    %c0_16 = arith.constant 0 : index
    %45 = vector.load %arg3[%c0_15, %c0_16] : memref<8x1xf32, #tpu.memory_space<vmem>>, vector<8x1xf32>
    tpu.vector_store %arg3[%c0_15, %c0_16], %44 {strides = array<i32>} : memref<8x1xf32, #tpu.memory_space<vmem>>, vector<8x1xf32>,
    return
  }
  func.func @transform_0(%arg0: i32) -> (i32, i32) {
    %c0_i32 = arith.constant 0 : i32
    %c0_i32_0 = arith.constant 0 : i32
    return %arg0, %c0_i32 : i32, i32
  }
  func.func @transform_1(%arg0: i32) -> (i32, i32) {
    %c0_i32 = arith.constant 0 : i32
    %c0_i32_0 = arith.constant 0 : i32
    %c0_i32_1 = arith.constant 0 : i32
    return %c0_i32, %c0_i32_0 : i32, i32
  }
  func.func @transform_2(%arg0: i32) -> (i32, i32) {
    %c0_i32 = arith.constant 0 : i32
    %c0_i32_0 = arith.constant 0 : i32
    return %arg0, %c0_i32 : i32, i32
  }
}

</mosaic_0001>

<llo_original>
// kernel: tpu_custom_call.1
$region0: #{tpu_custom_call.1}
  #allocation0 [shape = 'u32[]', space=smem, size = 0x4, offset = 0x4, fixed_abs, tag = 'smem constant byte address 0x4 - core index']
  #allocation1 [shape = 'u32[72,128]{1,0:T(1,128)}', space=vmem, size = 0x9000, scoped, tag = 'internal scratch']
  %s0 = inlined_call_operand.hbm [shape: f32[8,32], index: 0, kind: input, shape index: {}]
  %s1 = inlined_call_operand.hbm [shape: f32[8,32], index: 1, kind: input, shape index: {}]
  %s2 = inlined_call_operand.vmem [shape: f32[8,1], index: 2, kind: output, shape index: {}]
  %s3 = sld [smem:[#allocation0]]
  $region26: #{tpu_custom_call.1} parent=0
    _
  %s5 = ssub.s32 1, %s3
  %s6 = scalar_select 0, %s5, %s3
  $region1: #{tpu_custom_call.1} parent=0
    #allocation2 [shape = 'u8[4096]{0}', space=vmem, size = 0x1000, scoped, tag = 'input window, operand 0, single buffered']
    #allocation3 [shape = 's32[1]{0}', space=sflag, size = 0x4, scoped, tag = 'scoped memory for tpu_custom_call.1']
    #allocation4 [shape = 'u8[4096]{0}', space=vmem, size = 0x1000, scoped, tag = 'input window, operand 1, single buffered']
    #allocation5 [shape = 's32[1]{0}', space=sflag, size = 0x4, scoped, tag = 'scoped memory for tpu_custom_call.1']
    %7 = vsyncpa [#allocation3], 0
    %8 = vsyncpa [#allocation5], 0
    // Predicated region
    $region2: #{tpu_custom_call.1} parent=1 // pred_check
      _
    $region3: #{tpu_custom_call.1} parent=1 // pred_check_branch
      %10 = sbr.rel (0) target = $region5
    $region4: #{tpu_custom_call.1} parent=1 // pred_region
      %12 = vsyncadd [#allocation3], 0
      %s14 = sshll.u32 %s0, 4
      %s15 = int_to_ptr.hbm [resolvable:$true] %s14
      %s16 = sshll.u32 [#allocation2], 4
      %s17 = int_to_ptr.vmem [resolvable:$true] %s16
      %19 = dma.hbm_to_vmem [thread:$0]  %s15, 128, %s17, [#allocation3]
    $region5: #{tpu_custom_call.1} parent=1 // pred_fallthru
      _
    // Predicated region
    $region6: #{tpu_custom_call.1} parent=1 // pred_check
      _
    $region7: #{tpu_custom_call.1} parent=1 // pred_check_branch
      %21 = sbr.rel (0) target = $region9
    $region8: #{tpu_custom_call.1} parent=1 // pred_region
      %23 = vsyncadd [#allocation5], 0
      %s25 = sshll.u32 %s1, 4
      %s26 = int_to_ptr.hbm [resolvable:$true] %s25
      %s27 = sshll.u32 [#allocation4], 4
      %s28 = int_to_ptr.vmem [resolvable:$true] %s27
      %30 = dma.hbm_to_vmem [thread:$0]  %s26, 128, %s28, [#allocation5]
    $region9: #{tpu_custom_call.1} parent=1 // pred_fallthru
      _
    // Predicated region
    $region10: #{tpu_custom_call.1} parent=1 // pred_check
      _
    $region11: #{tpu_custom_call.1} parent=1 // pred_check_branch
      %32 = sbr.rel (0) target = $region13
    $region12: #{tpu_custom_call.1} parent=1 // pred_region
      %34 = dma.done [#allocation3], 128
    $region13: #{tpu_custom_call.1} parent=1 // pred_fallthru
      _
    // Predicated region
    $region14: #{tpu_custom_call.1} parent=1 // pred_check
      _
    $region15: #{tpu_custom_call.1} parent=1 // pred_check_branch
      %36 = sbr.rel (0) target = $region17
    $region16: #{tpu_custom_call.1} parent=1 // pred_region
      %38 = dma.done [#allocation5], 128
    $region17: #{tpu_custom_call.1} parent=1 // pred_fallthru
      _
    %s39 = smul.u32 0, 8
    %v40 = vld [vmem:[#allocation2] sm:$0xff]
    %v41 = vld [vmem:[#allocation4] sm:$0xff]
    %vm42 = vcmask 261120
    %v44 = vsel %vm42, %v40, 0
    %v47 = vsel %vm42, %v41, 0
    %49 = vmatpush.xpose.msra.mxu0 0.0
    %50 = vmatpush.xpose.msra.mxu0 0.0
    %51 = vmatpush.xpose.msra.mxu0 0.0
    %52 = vmatpush.xpose.msra.mxu0 0.0
    %53 = vmatpush.xpose.msra.mxu0 0.0
    %54 = vmatpush.xpose.msra.mxu0 0.0
    %55 = vmatpush.xpose.msra.mxu0 0.0
    %56 = vmatpush.xpose.msra.mxu0 0.0
    %57 = vmatpush.xpose.msra.mxu0 0.0
    %58 = vmatpush.xpose.msra.mxu0 0.0
    %59 = vmatpush.xpose.msra.mxu0 0.0
    %60 = vmatpush.xpose.msra.mxu0 0.0
    %61 = vmatpush.xpose.msra.mxu0 0.0
    %62 = vmatpush.xpose.msra.mxu0 0.0
    %63 = vmatpush.xpose.msra.mxu0 0.0
    %64 = vmatpush.xpose.msra.mxu0 %v47
    %65 = vmatmul.f32.gmra.mxu0 %v44
    %v66 = vpop.f32.mrf.mxu0
    %v67 = vadd.f32 0.0, %v66
    %68 = vdwg.mxu0
    %v69 = vmul.f32 %v67, 10.0
    %v70 = vmul.f32 %v69, 1.442695
    %v71 = vpow.pop %v70
    %v72 = vlaneseq
    %v73 = vshrl.u32 %v72, 7
    %v74 = vstv %s39
    %v75 = vadd.s32 %v73, %v74
    %v76 = vlaneseq
    %v77 = vand.u32 %v76, 127
    %vm78 = vcmp.eq.s32.totalorder %v77, %v75
    %vm79 = vcmp.lt.s32.totalorder %v75, 4
    %v80 = vadd.s32 %v75, 4
    %v81 = vsub.s32 %v75, 4
    %v82 = vsel %vm79, %v80, %v81
    %vm83 = vcmp.eq.s32.totalorder %v77, %v82
    %v84 = vsel %vm83, %v69, 0.0
    %vm85 = vcmask 64512
    %v86 = vsel %vm85, %v84, 0.0
    %87 = vadd.xlane.f32.xlu0 %v86
    %v88 = vpop.xlane.xlu0 %87
    %v89 = vsel %vm78, 0.0, %v71
    %v90 = vsel %vm85, %v89, 0.0
    %91 = vadd.xlane.f32.xlu0 %v90
    %v92 = vpop.xlane.xlu0 %91
    %v93 = vrcp.pop %v92
    %v94 = vlog2.pop %v92
    %v95 = vmul.f32 %v94, 0.6931472
    %v96 = vsel %vm83, 0.0, %v89
    %v97 = vmul.f32 %v96, %v93
    %v98 = vsub.f32 1.0, %v97
    %v99 = vmax.f32 %v98, 1e-30
    %v100 = vlog2.pop %v99
    %v101 = vmul.f32 %v100, 0.6931472
    %v102 = vsel %vm85, %v101, 0.0
    %103 = vadd.xlane.f32.xlu0 %v102
    %v104 = vpop.xlane.xlu0 %103
    %v105 = vsub.f32 %v88, %v95
    %v106 = vadd.f32 %v105, %v104
    %vm107 = vcmask 7168
    %108 = vst.msk [vmem:[%s2] sm:$0xff] %vm107, %v106
    // Predicated region
    $region18: #{tpu_custom_call.1} parent=1 // pred_check
      _
    $region19: #{tpu_custom_call.1} parent=1 // pred_check_branch
      %110 = sbr.rel (0) target = $region21
    $region20: #{tpu_custom_call.1} parent=1 // pred_region
      _
    $region21: #{tpu_custom_call.1} parent=1 // pred_fallthru
      _
    // Predicated region
    $region22: #{tpu_custom_call.1} parent=1 // pred_check
      _
    $region23: #{tpu_custom_call.1} parent=1 // pred_check_branch
      %112 = sbr.rel (0) target = $region25
    $region24: #{tpu_custom_call.1} parent=1 // pred_region
      _
    $region25: #{tpu_custom_call.1} parent=1 // pred_fallthru
      _
    %113 = vsyncpa [#allocation3], 1
    %114 = vsyncpa [#allocation5], 1

// kernel: tpu_custom_call.1
$region0: #{tpu_custom_call.1}
  #allocation0 [shape = 'u32[]', space=smem, size = 0x4, offset = 0x4, fixed_abs, tag = 'smem constant byte address 0x4 - core index']
  #allocation1 [shape = 'u32[72,128]{1,0:T(1,128)}', space=vmem, size = 0x9000, scoped, tag = 'internal scratch']
  %s0 = inlined_call_operand.hbm [shape: f32[8,32], index: 0, kind: input, shape index: {}]
  %s1 = inlined_call_operand.hbm [shape: f32[8,32], index: 1, kind: input, shape index: {}]
  %s2 = inlined_call_operand.vmem [shape: f32[8,1], index: 2, kind: output, shape index: {}]
  %s3 = sld [smem:[#allocation0]]
  $region26: #{tpu_custom_call.1} parent=0
    _
  %s5 = ssub.s32 1, %s3
  %s6 = scalar_select 0, %s5, %s3
  $region1: #{tpu_custom_call.1} parent=0
    #allocation2 [shape = 'u8[4096]{0}', space=vmem, size = 0x1000, scoped, tag = 'input window, operand 0, single buffered']
    #allocation3 [shape = 's32[1]{0}', space=sflag, size = 0x4, scoped, tag = 'scoped memory for tpu_custom_call.1']
    #allocation4 [shape = 'u8[4096]{0}', space=vmem, size = 0x1000, scoped, tag = 'input window, operand 1, single buffered']
    #allocation5 [shape = 's32[1]{0}', space=sflag, size = 0x4, scoped, tag = 'scoped memory for tpu_custom_call.1']
    %7 = vsyncpa [#allocation3], 0
    %8 = vsyncpa [#allocation5], 0
    // Predicated region
    $region2: #{tpu_custom_call.1} parent=1 // pred_check
      _
    $region3: #{tpu_custom_call.1} parent=1 // pred_check_branch
      %10 = sbr.rel (0) target = $region5
    $region4: #{tpu_custom_call.1} parent=1 // pred_region
      %12 = vsyncadd [#allocation3], 0
      %s14 = sshll.u32 %s0, 4
      %s15 = int_to_ptr.hbm [resolvable:$true] %s14
      %s16 = sshll.u32 [#allocation2], 4
      %s17 = int_to_ptr.vmem [resolvable:$true] %s16
      %19 = dma.hbm_to_vmem [thread:$0]  %s15, 128, %s17, [#allocation3]
    $region5: #{tpu_custom_call.1} parent=1 // pred_fallthru
      _
    // Predicated region
    $region6: #{tpu_custom_call.1} parent=1 // pred_check
      _
    $region7: #{tpu_custom_call.1} parent=1 // pred_check_branch
      %21 = sbr.rel (0) target = $region9
    $region8: #{tpu_custom_call.1} parent=1 // pred_region
      %23 = vsyncadd [#allocation5], 0
      %s25 = sshll.u32 %s1, 4
      %s26 = int_to_ptr.hbm [resolvable:$true] %s25
      %s27 = sshll.u32 [#allocation4], 4
      %s28 = int_to_ptr.vmem [resolvable:$true] %s27
      %30 = dma.hbm_to_vmem [thread:$0]  %s26, 128, %s28, [#allocation5]
    $region9: #{tpu_custom_call.1} parent=1 // pred_fallthru
      _
    // Predicated region
    $region10: #{tpu_custom_call.1} parent=1 // pred_check
      _
    $region11: #{tpu_custom_call.1} parent=1 // pred_check_branch
      %32 = sbr.rel (0) target = $region13
    $region12: #{tpu_custom_call.1} parent=1 // pred_region
      %34 = dma.done [#allocation3], 128
    $region13: #{tpu_custom_call.1} parent=1 // pred_fallthru
      _
    // Predicated region
    $region14: #{tpu_custom_call.1} parent=1 // pred_check
      _
    $region15: #{tpu_custom_call.1} parent=1 // pred_check_branch
      %36 = sbr.rel (0) target = $region17
    $region16: #{tpu_custom_call.1} parent=1 // pred_region
      %38 = dma.done [#allocation5], 128
    $region17: #{tpu_custom_call.1} parent=1 // pred_fallthru
      _
    %s39 = smul.u32 0, 8
    %v40 = vld [vmem:[#allocation2] sm:$0xff]
    %v41 = vld [vmem:[#allocation4] sm:$0xff]
    %vm42 = vcmask 261120
    %v44 = vsel %vm42, %v40, 0
    %v47 = vsel %vm42, %v41, 0
    %49 = vmatpush.xpose.msra.mxu0 0.0
    %50 = vmatpush.xpose.msra.mxu0 0.0
    %51 = vmatpush.xpose.msra.mxu0 0.0
    %52 = vmatpush.xpose.msra.mxu0 0.0
    %53 = vmatpush.xpose.msra.mxu0 0.0
    %54 = vmatpush.xpose.msra.mxu0 0.0
    %55 = vmatpush.xpose.msra.mxu0 0.0
    %56 = vmatpush.xpose.msra.mxu0 0.0
    %57 = vmatpush.xpose.msra.mxu0 0.0
    %58 = vmatpush.xpose.msra.mxu0 0.0
    %59 = vmatpush.xpose.msra.mxu0 0.0
    %60 = vmatpush.xpose.msra.mxu0 0.0
    %61 = vmatpush.xpose.msra.mxu0 0.0
    %62 = vmatpush.xpose.msra.mxu0 0.0
    %63 = vmatpush.xpose.msra.mxu0 0.0
    %64 = vmatpush.xpose.msra.mxu0 %v47
    %65 = vmatmul.f32.gmra.mxu0 %v44
    %v66 = vpop.f32.mrf.mxu0
    %v67 = vadd.f32 0.0, %v66
    %68 = vdwg.mxu0
    %v69 = vmul.f32 %v67, 10.0
    %v70 = vmul.f32 %v69, 1.442695
    %v71 = vpow.pop %v70
    %v72 = vlaneseq
    %v73 = vshrl.u32 %v72, 7
    %v74 = vstv %s39
    %v75 = vadd.s32 %v73, %v74
    %v76 = vlaneseq
    %v77 = vand.u32 %v76, 127
    %vm78 = vcmp.eq.s32.totalorder %v77, %v75
    %vm79 = vcmp.lt.s32.totalorder %v75, 4
    %v80 = vadd.s32 %v75, 4
    %v81 = vsub.s32 %v75, 4
    %v82 = vsel %vm79, %v80, %v81
    %vm83 = vcmp.eq.s32.totalorder %v77, %v82
    %v84 = vsel %vm83, %v69, 0.0
    %vm85 = vcmask 64512
    %v86 = vsel %vm85, %v84, 0.0
    %87 = vadd.xlane.f32.xlu0 %v86
    %v88 = vpop.xlane.xlu0 %87
    %v89 = vsel %vm78, 0.0, %v71
    %v90 = vsel %vm85, %v89, 0.0
    %91 = vadd.xlane.f32.xlu0 %v90
    %v92 = vpop.xlane.xlu0 %91
    %v93 = vrcp.pop %v92
    %v94 = vlog2.pop %v92
    %v95 = vmul.f32 %v94, 0.6931472
    %v96 = vsel %vm83, 0.0, %v89
    %v97 = vmul.f32 %v96, %v93
    %v98 = vsub.f32 1.0, %v97
    %v99 = vmax.f32 %v98, 1e-30
    %v100 = vlog2.pop %v99
    %v101 = vmul.f32 %v100, 0.6931472
    %v102 = vsel %vm85, %v101, 0.0
    %103 = vadd.xlane.f32.xlu0 %v102
    %v104 = vpop.xlane.xlu0 %103
    %v105 = vsub.f32 %v88, %v95
    %v106 = vadd.f32 %v105, %v104
    %vm107 = vcmask 7168
    %108 = vst.msk [vmem:[%s2] sm:$0xff] %vm107, %v106
    // Predicated region
    $region18: #{tpu_custom_call.1} parent=1 // pred_check
      _
    $region19: #{tpu_custom_call.1} parent=1 // pred_check_branch
      %110 = sbr.rel (0) target = $region21
    $region20: #{tpu_custom_call.1} parent=1 // pred_region
      _
    $region21: #{tpu_custom_call.1} parent=1 // pred_fallthru
      _
    // Predicated region
    $region22: #{tpu_custom_call.1} parent=1 // pred_check
      _
    $region23: #{tpu_custom_call.1} parent=1 // pred_check_branch
      %112 = sbr.rel (0) target = $region25
    $region24: #{tpu_custom_call.1} parent=1 // pred_region
      _
    $region25: #{tpu_custom_call.1} parent=1 // pred_fallthru
      _
    %113 = vsyncpa [#allocation3], 1
    %114 = vsyncpa [#allocation5], 1

</llo_original>
